<compile_context>
chip_gen: v7x
topology: tpu7x:2x2x1
jax: 0.10.0
libtpu: 0.0.40
codegen_flags: <defaults>
</compile_context>

<pallas_src>
import functools

import jax
import jax.numpy as jnp
from jax.experimental import pallas as pl
from jax.experimental.pallas import tpu as pltpu


def _round_up(x, m):
    return ((x + m - 1) // m) * m


def _chip_config():
    """Returns (pipelined-block VMEM budget, vmem_limit_bytes, min grid steps)."""
    kind = ""
    try:
        kind = jax.devices()[0].device_kind.lower()
    except Exception:  # pragma: no cover - defensive only
        pass
    if "v7" in kind:
        # 64 MiB VMEM per TC: stay well under, and keep >=4 grid steps so both
        # TensorCores get work and prefetch/writeback can overlap.
        return 28 << 20, 48 << 20, 4
    if "v6" in kind:
        # 128 MiB physical VMEM: big resident tiles, raise the scoped limit.
        return 56 << 20, 96 << 20, 1
    if "v5" in kind:
        # 128 MiB physical but only a 16 MiB default scoped limit -> raise it.
        return 48 << 20, 80 << 20, 1
    # Unknown chip: conservative budget that also fits v7x, keep >=4 steps.
    return 24 << 20, 48 << 20, 4


# -----------------------------------------------------------------------------
# Kernel 1: batched 1x1 Conv1d == one lane-dense matmul, row-tiled over the
# flattened (B*sourceL) axis.
#   ctx_ref : (row_tile, cdf)      context transposed/flattened in the wrapper
#   w_ref   : (cdf, idf_pad)       conv weight, pre-transposed (grid-constant)
#   b_ref   : (1, idf_pad)         conv bias, f32 (grid-constant)
#   out_ref : (row_tile, idf_pad)  lane-dense store (idf_pad multiple of 128)
# -----------------------------------------------------------------------------
def _conv1x1_kernel(ctx_ref, w_ref, b_ref, out_ref):
    acc = jax.lax.dot_general(
        ctx_ref[...], w_ref[...],
        dimension_numbers=(((1,), (0,)), ((), ())),
        preferred_element_type=jnp.float32)
    out_ref[...] = (acc + b_ref[...]).astype(out_ref.dtype)


# -----------------------------------------------------------------------------
# Kernel 2: attention over Bt batch elements per grid step.
#   tgt_ref  : (Bt, idf_pad, qpad)     target, queryL padded to multiple of 128
#   tgtT_ref : (Bt, qpad, idf_pad)     pre-transposed target (second matmul RHS)
#   src_ref  : (Bt, sourceL, idf_pad)  conv output, (sourceL, idf) oriented
#   out_ref  : (Bt, sourceL, idf_pad)  lane-dense f32 store
# -----------------------------------------------------------------------------
def _attention_kernel(tgt_ref, tgtT_ref, src_ref, out_ref, *, query_len):
    bt, _, qpad = tgt_ref.shape
    source_len = src_ref.shape[1]
    neg = jnp.float32(-1e30)

    # Hoisted out of the per-batch loop: JAX does not CSE broadcast_in_dim, so
    # building this per iteration would re-emit the iota+compare Bt times.
    q_valid = None
    if qpad != query_len:
        q_valid = (jax.lax.broadcasted_iota(jnp.int32, (source_len, qpad), 1)
                   < query_len)

    def body(i, carry):
        tgt = tgt_ref[i]      # (idf_pad, qpad)     compute dtype
        tgt_t = tgtT_ref[i]   # (qpad, idf_pad)     compute dtype
        src = src_ref[i]      # (sourceL, idf_pad)  compute dtype

        # attnT[s, q] = sum_f sourceT[f, s] * target[f, q]   ( == attn[q, s] )
        attn_t = jax.lax.dot_general(
            src, tgt, dimension_numbers=(((1,), (0,)), ((), ())),
            preferred_element_type=jnp.float32)              # (sourceL, qpad) f32

        if q_valid is not None:
            # Padded query columns must not contribute to the softmax sum.
            attn_t = jnp.where(q_valid, attn_t, neg)

        # Softmax over queryL (PyTorch Softmax(dim=1)) == last (lane) axis here.
        m = jnp.max(attn_t, axis=-1, keepdims=True)
        e = jnp.exp(attn_t - m)
        denom = jnp.sum(e, axis=-1, keepdims=True)
        p = e * pl.reciprocal(denom, approx=True)            # EUP vrcp

        # outT[s, f] = sum_q p[s, q] * targetT[q, f]  ( == text_weighted[f, s] )
        out_t = jax.lax.dot_general(
            p.astype(tgt_t.dtype), tgt_t,
            dimension_numbers=(((1,), (0,)), ((), ())),
            preferred_element_type=jnp.float32)              # (sourceL, idf_pad)

        out_ref[i] = out_t.astype(out_ref.dtype)
        return carry

    jax.lax.fori_loop(0, bt, body, 0, unroll=2 if bt >= 2 else 1)


def _pick_batch_tile(batch, idf_pad, source_len, qpad, in_itemsize, out_itemsize,
                     budget_bytes, min_grid_steps):
    """Largest Bt whose double-buffered pipelined blocks plus the in-kernel f32
    intermediates fit `budget_bytes`, optionally capped so the grid keeps at
    least `min_grid_steps` steps (v7x: >=2 steps per TensorCore)."""
    # Pipelined blocks (x2 buffers each) per batch element.
    per_elem = 2 * in_itemsize * (idf_pad * qpad             # target
                                  + qpad * idf_pad           # targetT
                                  + source_len * idf_pad)    # sourceT
    per_elem += 2 * out_itemsize * source_len * idf_pad       # output
    # f32 softmax intermediates (attn_t, e, p) + out_t live per fori_loop
    # iteration (x2 headroom for unroll=2 overlap) + the hoisted query mask.
    fixed = 4 * (2 * (3 * source_len * qpad + source_len * idf_pad)
                 + source_len * qpad)
    bt = max(1, int((budget_bytes - fixed) // max(per_elem, 1)))
    bt = min(bt, batch)
    if min_grid_steps > 1:
        bt = min(bt, max(1, batch // min_grid_steps))
    return bt


def global_attention_text(inp, context, weight, bias, *, compute_dtype=jnp.bfloat16):
    """inp: (B, idf, ih, iw), context: (B, cdf, sourceL),
    weight: (idf, cdf), bias: (idf,)  ->  (B, idf, sourceL) float32.

    compute_dtype is the MXU-operand dtype (bf16 recommended on v5e/v6e/v7x);
    accumulation and the softmax stay in float32."""
    B, idf, ih, iw = inp.shape
    _, cdf, sourceL = context.shape
    queryL = ih * iw
    qpad = _round_up(queryL, 128)
    idf_pad = _round_up(idf, 128)        # lane-dense stores in both kernels
    in_itemsize = jnp.dtype(compute_dtype).itemsize

    budget, vmem_limit, min_grid_steps = _chip_config()

    # ---- layout plumbing (plain XLA): reshape / pad / transpose only ----
    target = inp.reshape(B, idf, queryL).astype(compute_dtype)
    target = jnp.pad(target, ((0, 0), (0, idf_pad - idf), (0, qpad - queryL)))
    targetT = target.transpose(0, 2, 1)                       # (B, qpad, idf_pad)

    rows = B * sourceL
    row_tile = min(512, _round_up(rows, 8))
    rows_pad = _round_up(rows, row_tile)
    ctx_flat = context.transpose(0, 2, 1).reshape(rows, cdf).astype(compute_dtype)
    if rows_pad != rows:
        ctx_flat = jnp.pad(ctx_flat, ((0, rows_pad - rows), (0, 0)))
    w_t = jnp.pad(weight.T.astype(compute_dtype), ((0, 0), (0, idf_pad - idf)))
    bias_row = jnp.pad(bias.astype(jnp.float32), (0, idf_pad - idf)).reshape(1, idf_pad)

    # ---- kernel 1: hoisted 1x1 conv, row-tiled batch-wide matmul ----
    src_flat = pl.pallas_call(
        _conv1x1_kernel,
        out_shape=jax.ShapeDtypeStruct((rows_pad, idf_pad), compute_dtype),
        grid=(rows_pad // row_tile,),
        in_specs=[
            pl.BlockSpec((row_tile, cdf), lambda r: (r, 0)),
            pl.BlockSpec((cdf, idf_pad), lambda r: (0, 0)),    # grid-constant
            pl.BlockSpec((1, idf_pad), lambda r: (0, 0)),      # grid-constant
        ],
        out_specs=pl.BlockSpec((row_tile, idf_pad), lambda r: (r, 0)),
        compiler_params=pltpu.CompilerParams(
            dimension_semantics=("parallel",)),
    )(ctx_flat, w_t, bias_row)
    src_t = src_flat[:rows].reshape(B, sourceL, idf_pad)       # sourceT, transposed

    # ---- kernel 2: attention, Bt batch elements per grid step ----
    Bt = _pick_batch_tile(B, idf_pad, sourceL, qpad, in_itemsize, 4,
                          budget, min_grid_steps)
    B_pad = _round_up(B, Bt)
    if B_pad != B:   # pad the batch instead of collapsing Bt (prime B etc.)
        pad = B_pad - B
        target = jnp.pad(target, ((0, pad), (0, 0), (0, 0)))
        targetT = jnp.pad(targetT, ((0, pad), (0, 0), (0, 0)))
        src_t = jnp.pad(src_t, ((0, pad), (0, 0), (0, 0)))

    # TODO(synk): if an xprof trace on v7x shows exposed DMA on the target read,
    # add pipeline_mode=pl.Buffered(3) to the first in_spec.
    out_t = pl.pallas_call(
        functools.partial(_attention_kernel, query_len=queryL),
        out_shape=jax.ShapeDtypeStruct((B_pad, sourceL, idf_pad), jnp.float32),
        grid=(B_pad // Bt,),
        in_specs=[
            pl.BlockSpec((Bt, idf_pad, qpad), lambda b: (b, 0, 0)),
            pl.BlockSpec((Bt, qpad, idf_pad), lambda b: (b, 0, 0)),
            pl.BlockSpec((Bt, sourceL, idf_pad), lambda b: (b, 0, 0)),
        ],
        out_specs=pl.BlockSpec((Bt, sourceL, idf_pad), lambda b: (b, 0, 0)),
        compiler_params=pltpu.CompilerParams(
            dimension_semantics=("parallel",),   # batch tiles shard across TCs
            vmem_limit_bytes=vmem_limit),
    )(target, targetT, src_t)

    # Back to the module's (B, idf, sourceL) layout (layout plumbing only).
    return out_t[:B, :, :idf].transpose(0, 2, 1)


def _reference(inp, context, weight, bias):
    B, idf, ih, iw = inp.shape
    queryL = ih * iw
    target = inp.reshape(B, idf, queryL)
    sourceT = jnp.einsum("oc,bcl->bol", weight, context) + bias[None, :, None]
    attn = jnp.einsum("biq,bil->bql", target, sourceT)
    attn = jax.nn.softmax(attn, axis=1)            # Softmax(dim=1) over queryL
    return jnp.einsum("biq,bql->bil", target, attn)


if __name__ == "__main__":
    # Small shapes consistent with the module.
    B, idf, cdf = 2, 32, 16
    ih, iw, sourceL = 4, 4, 8

    key = jax.random.PRNGKey(0)
    k1, k2, k3, k4 = jax.random.split(key, 4)
    inp = jax.random.normal(k1, (B, idf, ih, iw), dtype=jnp.float32)
    context = jax.random.normal(k2, (B, cdf, sourceL), dtype=jnp.float32)
    # Deterministic "Conv1d(cdf, idf, 1)" parameters (synthetic, not a checkpoint).
    weight = jax.random.normal(k3, (idf, cdf), dtype=jnp.float32) * 0.1
    bias = jax.random.normal(k4, (idf,), dtype=jnp.float32) * 0.1

    ref = _reference(inp, context, weight, bias)

    # f32 MXU-operand path: checks the restructured math. Tolerance covers the
    # approx EUP reciprocal and any reduced-precision MXU pass for f32 operands.
    out_f32 = jax.block_until_ready(
        global_attention_text(inp, context, weight, bias, compute_dtype=jnp.float32))
    assert out_f32.shape == (B, idf, sourceL)
    err_f32 = float(jnp.max(jnp.abs(out_f32 - ref)))
    assert err_f32 < 5e-2, f"f32 path mismatch vs reference (max err {err_f32})"

    # bf16 MXU-operand path (perf default); f32 accumulation/softmax. bf16
    # operand quantization of target/context/weight is the dominant error source.
    out_bf16 = jax.block_until_ready(
        global_attention_text(inp, context, weight, bias, compute_dtype=jnp.bfloat16))
    assert out_bf16.shape == (B, idf, sourceL)
    err_bf16 = float(jnp.max(jnp.abs(out_bf16 - ref)))
    assert err_bf16 < 1.5e-1, f"bf16 path mismatch vs reference (max err {err_bf16})"

    print("KERNEL_OK")
</pallas_src>

<mosaic_0001>
module attributes {stable_mosaic.version = 11 : i64} {
  func.func @_conv1x1_kernel(%arg0: i32, %arg1: memref<16x16xf32, #tpu.memory_space<vmem>>, %arg2: memref<16x128xf32, #tpu.memory_space<vmem>>, %arg3: memref<1x128xf32, #tpu.memory_space<vmem>>, %arg4: memref<16x128xf32, #tpu.memory_space<vmem>>) attributes {dimension_semantics = [#tpu.dimension_semantics<parallel>], iteration_bounds = array<i64: 1>, scalar_prefetch = 0 : i64, scratch_operands = 0 : i64, tpu.core_type = #tpu.core_type<tc>, window_params = [{transform_indices = @transform_0, window_bounds = array<i64: 16, 16>}, {pipeline_mode = #tpu.pipeline_mode<synchronous>, transform_indices = @transform_1, window_bounds = array<i64: 16, 128>}, {pipeline_mode = #tpu.pipeline_mode<synchronous>, transform_indices = @transform_2, window_bounds = array<i64: 1, 128>}, {transform_indices = @transform_3, window_bounds = array<i64: 16, 128>}]} {
    %c0 = arith.constant 0 : index
    %c0_0 = arith.constant 0 : index
    %0 = vector.load %arg1[%c0, %c0_0] : memref<16x16xf32, #tpu.memory_space<vmem>>, vector<16x16xf32>
    %c0_1 = arith.constant 0 : index
    %c0_2 = arith.constant 0 : index
    %1 = vector.load %arg2[%c0_1, %c0_2] : memref<16x128xf32, #tpu.memory_space<vmem>>, vector<16x128xf32>
    %cst = arith.constant dense<0.000000e+00> : vector<16x128xf32>
    %2 = tpu.matmul %0, %1, %cst {dimension_numbers = #tpu.dot_dimension_numbers<[1], [0], [0], [1], [0, 0, 1, 1], [], []>} : vector<16x16xf32>, vector<16x128xf32>, vector<16x128xf32> -> vector<16x128xf32>
    %c0_3 = arith.constant 0 : index
    %c0_4 = arith.constant 0 : index
    %3 = vector.load %arg3[%c0_3, %c0_4] : memref<1x128xf32, #tpu.memory_space<vmem>>, vector<1x128xf32>
    %4 = vector.broadcast %3 : vector<1x128xf32> to vector<16x128xf32>
    %5 = arith.addf %2, %4 : vector<16x128xf32>
    %c0_5 = arith.constant 0 : index
    %c0_6 = arith.constant 0 : index
    %6 = vector.load %arg4[%c0_5, %c0_6] : memref<16x128xf32, #tpu.memory_space<vmem>>, vector<16x128xf32>
    tpu.vector_store %arg4[%c0_5, %c0_6], %5 {strides = array<i32>} : memref<16x128xf32, #tpu.memory_space<vmem>>, vector<16x128xf32>,
    return
  }
  func.func @transform_0(%arg0: i32) -> (i32, i32) {
    %c0_i32 = arith.constant 0 : i32
    %c0_i32_0 = arith.constant 0 : i32
    return %arg0, %c0_i32 : i32, i32
  }
  func.func @transform_1(%arg0: i32) -> (i32, i32) {
    %c0_i32 = arith.constant 0 : i32
    %c0_i32_0 = arith.constant 0 : i32
    %c0_i32_1 = arith.constant 0 : i32
    return %c0_i32, %c0_i32_0 : i32, i32
  }
  func.func @transform_2(%arg0: i32) -> (i32, i32) {
    %c0_i32 = arith.constant 0 : i32
    %c0_i32_0 = arith.constant 0 : i32
    %c0_i32_1 = arith.constant 0 : i32
    return %c0_i32, %c0_i32_0 : i32, i32
  }
  func.func @transform_3(%arg0: i32) -> (i32, i32) {
    %c0_i32 = arith.constant 0 : i32
    %c0_i32_0 = arith.constant 0 : i32
    return %arg0, %c0_i32 : i32, i32
  }
}

</mosaic_0001>

<llo_original>
// kernel: tpu_custom_call.1
$region0: #{tpu_custom_call.1}
  #allocation0 [shape = 'u32[]', space=smem, size = 0x4, offset = 0x4, fixed_abs, tag = 'smem constant byte address 0x4 - core index']
  #allocation1 [shape = 'u32[144,128]{1,0:T(1,128)}', space=vmem, size = 0x12000, scoped, tag = 'internal scratch']
  %s0 = inlined_call_operand.hbm [shape: f32[16,16], index: 0, kind: input, shape index: {}]
  %s1 = inlined_call_operand.hbm [shape: f32[16,128], index: 1, kind: input, shape index: {}]
  %s2 = inlined_call_operand.vmem [shape: f32[1,128], index: 2, kind: input, shape index: {}]
  %s3 = inlined_call_operand.hbm [shape: f32[16,128], index: 3, kind: output, shape index: {}]
  %s4 = sld [smem:[#allocation0]]
  $region30: #{tpu_custom_call.1} parent=0
    _
  %s6 = ssub.s32 1, %s4
  %s7 = scalar_select 0, %s6, %s4
  $region1: #{tpu_custom_call.1} parent=0
    #allocation2 [shape = 'u8[8192]{0}', space=vmem, size = 0x2000, scoped, tag = 'input window, operand 0, single buffered']
    #allocation3 [shape = 's32[1]{0}', space=sflag, size = 0x4, scoped, tag = 'scoped memory for tpu_custom_call.1']
    #allocation4 [shape = 's32[1]{0}', space=sflag, size = 0x4, scoped, tag = 'scoped memory for tpu_custom_call.1']
    #allocation5 [shape = 'u8[8192]{0}', space=vmem, size = 0x2000, scoped, tag = 'input window, operand 1, single buffered']
    #allocation6 [shape = 's32[1]{0}', space=sflag, size = 0x4, scoped, tag = 'scoped memory for tpu_custom_call.1']
    #allocation7 [shape = 'u8[8192]{0}', space=vmem, size = 0x2000, scoped, tag = 'output window, operand 0, single buffered']
    %8 = vsyncpa [#allocation3], 0
    %9 = vsyncpa [#allocation6], 0
    %10 = vsyncpa [#allocation4], 0
    // Predicated region
    $region2: #{tpu_custom_call.1} parent=1 // pred_check
      _
    $region3: #{tpu_custom_call.1} parent=1 // pred_check_branch
      %12 = sbr.rel (0) target = $region5
    $region4: #{tpu_custom_call.1} parent=1 // pred_region
      %s14 = ssub.s32 256, 256
      %15 = vsyncadd [#allocation3], %s14
      %s16 = sshll.u32 [#allocation2], 4
      %s17 = int_to_ptr.vmem [resolvable:$true] %s16
      %22 = dma.hbm_to_vmem [thread:$0]  %s0, 256, %s17, [#allocation3], 128, 128, 8
    $region5: #{tpu_custom_call.1} parent=1 // pred_fallthru
      _
    // Predicated region
    $region6: #{tpu_custom_call.1} parent=1 // pred_check
      _
    $region7: #{tpu_custom_call.1} parent=1 // pred_check_branch
      %24 = sbr.rel (0) target = $region9
    $region8: #{tpu_custom_call.1} parent=1 // pred_region
      %s26 = ssub.s32 256, 256
      %27 = vsyncadd [#allocation6], %s26
      %s28 = sshll.u32 [#allocation5], 4
      %s29 = int_to_ptr.vmem [resolvable:$true] %s28
      %34 = dma.hbm_to_vmem [thread:$0]  %s1, 256, %s29, [#allocation6], 128, 128, 8
    $region9: #{tpu_custom_call.1} parent=1 // pred_fallthru
      _
    // Predicated region
    $region10: #{tpu_custom_call.1} parent=1 // pred_check
      _
    $region11: #{tpu_custom_call.1} parent=1 // pred_check_branch
      %36 = sbr.rel (0) target = $region13
    $region12: #{tpu_custom_call.1} parent=1 // pred_region
      _
    $region13: #{tpu_custom_call.1} parent=1 // pred_fallthru
      _
    // Predicated region
    $region14: #{tpu_custom_call.1} parent=1 // pred_check
      _
    $region15: #{tpu_custom_call.1} parent=1 // pred_check_branch
      %38 = sbr.rel (0) target = $region17
    $region16: #{tpu_custom_call.1} parent=1 // pred_region
      %39 = dma.done [#allocation3], 256
    $region17: #{tpu_custom_call.1} parent=1 // pred_fallthru
      _
    // Predicated region
    $region18: #{tpu_custom_call.1} parent=1 // pred_check
      _
    $region19: #{tpu_custom_call.1} parent=1 // pred_check_branch
      %41 = sbr.rel (0) target = $region21
    $region20: #{tpu_custom_call.1} parent=1 // pred_region
      %42 = dma.done [#allocation6], 256
    $region21: #{tpu_custom_call.1} parent=1 // pred_fallthru
      _
    %v43 = vld [vmem:[#allocation2] sm:$0xff]
    %v44 = vld [vmem:[#allocation2 + $0x8] sm:$0xff]
    %v45 = vld [vmem:[#allocation5] sm:$0xff]
    %v46 = vld [vmem:[#allocation5 + $0x8] sm:$0xff]
    %v47 = vld [vmem:[%s2] sm:$0x1]
    %v49 = vlaneseq
    %v50 = vshrl.u32 %v49, 7
    %v51 = vsub.s32 0, %v50
    %v52 = vrot.slane %v47, %v51
    %vm54 = vcmask 130048
    %v56 = vsel %vm54, %v43, 0
    %v59 = vsel %vm54, %v44, 0
    %61 = vmatprep.subr.mxu0 0.0
    %62 = vmatpush1.msra.mxu0 %v45
    %63 = vmatprep.subr.mxu0 0.0
    %64 = vmatpush1.msra.mxu0 %v46
    %65 = vmatprep.subr.mxu0 0.0
    %66 = vmatpush1.msra.mxu0 0.0
    %67 = vmatprep.subr.mxu0 0.0
    %68 = vmatpush1.msra.mxu0 0.0
    %69 = vmatprep.subr.mxu0 0.0
    %70 = vmatpush1.msra.mxu0 0.0
    %71 = vmatprep.subr.mxu0 0.0
    %72 = vmatpush1.msra.mxu0 0.0
    %73 = vmatprep.subr.mxu0 0.0
    %74 = vmatpush1.msra.mxu0 0.0
    %75 = vmatprep.subr.mxu0 0.0
    %76 = vmatpush1.msra.mxu0 0.0
    %77 = vmatprep.subr.mxu0 0.0
    %78 = vmatpush1.msra.mxu0 0.0
    %79 = vmatprep.subr.mxu0 0.0
    %80 = vmatpush1.msra.mxu0 0.0
    %81 = vmatprep.subr.mxu0 0.0
    %82 = vmatpush1.msra.mxu0 0.0
    %83 = vmatprep.subr.mxu0 0.0
    %84 = vmatpush1.msra.mxu0 0.0
    %85 = vmatprep.subr.mxu0 0.0
    %86 = vmatpush1.msra.mxu0 0.0
    %87 = vmatprep.subr.mxu0 0.0
    %88 = vmatpush1.msra.mxu0 0.0
    %89 = vmatprep.subr.mxu0 0.0
    %90 = vmatpush1.msra.mxu0 0.0
    %91 = vmatprep.subr.mxu0 0.0
    %92 = vmatpush1.msra.mxu0 0.0
    %93 = vmatprep.subr.mxu0 0.0
    %94 = vmatpush1.msra.mxu0 0.0
    %95 = vmatprep.subr.mxu0 0.0
    %96 = vmatpush1.msra.mxu0 0.0
    %97 = vmatprep.subr.mxu0 0.0
    %98 = vmatpush1.msra.mxu0 0.0
    %99 = vmatprep.subr.mxu0 0.0
    %100 = vmatpush1.msra.mxu0 0.0
    %101 = vmatprep.subr.mxu0 0.0
    %102 = vmatpush1.msra.mxu0 0.0
    %103 = vmatprep.subr.mxu0 0.0
    %104 = vmatpush1.msra.mxu0 0.0
    %105 = vmatprep.subr.mxu0 0.0
    %106 = vmatpush1.msra.mxu0 0.0
    %107 = vmatprep.subr.mxu0 0.0
    %108 = vmatpush1.msra.mxu0 0.0
    %109 = vmatprep.subr.mxu0 0.0
    %110 = vmatpush1.msra.mxu0 0.0
    %111 = vmatprep.subr.mxu0 0.0
    %112 = vmatpush1.msra.mxu0 0.0
    %113 = vmatprep.subr.mxu0 0.0
    %114 = vmatpush1.msra.mxu0 0.0
    %115 = vmatprep.subr.mxu0 0.0
    %116 = vmatpush1.msra.mxu0 0.0
    %117 = vmatprep.subr.mxu0 0.0
    %118 = vmatpush1.msra.mxu0 0.0
    %119 = vmatprep.subr.mxu0 0.0
    %120 = vmatpush1.msra.mxu0 0.0
    %121 = vmatprep.subr.mxu0 0.0
    %122 = vmatpush1.msra.mxu0 0.0
    %123 = vmatprep.subr.mxu0 0.0
    %124 = vmatpush1.msra.mxu0 0.0
    %125 = vmatprep.mubr.f32.mxu0 0.0
    %126 = vmatmul.mubr.f32.gmra.mrb[0].mxu0 %v56
    %v127 = vpop.f32.mrb[0].mxu0
    %v128 = vadd.f32 %v52, %v127
    %v129 = vpop.f32.mrb[0].mxu0
    %130 = vmatprep.mubr.f32.mxu0 0.0
    %131 = vmatmul.mubr.f32.gmra.mrb[0].mxu0 %v59
    %v132 = vpop.f32.mrb[0].mxu0
    %v133 = vadd.f32 %v52, %v132
    %v134 = vpop.f32.mrb[0].mxu0
    %135 = vdwg.mxu0
    %136 = vst [vmem:[#allocation7] sm:$0xff] %v128
    %137 = vst [vmem:[#allocation7 + $0x8] sm:$0xff] %v133
    // Predicated region
    $region22: #{tpu_custom_call.1} parent=1 // pred_check
      _
    $region23: #{tpu_custom_call.1} parent=1 // pred_check_branch
      %139 = sbr.rel (0) target = $region25
    $region24: #{tpu_custom_call.1} parent=1 // pred_region
      %s141 = ssub.s32 256, 256
      %142 = vsyncadd [#allocation4], %s141
      %s143 = sshll.u32 [#allocation7], 4
      %s144 = int_to_ptr.vmem [resolvable:$true] %s143
      %149 = dma.vmem_to_hbm [thread:$0]  %s144, 256, %s3, [#allocation4], 128, 128, 8
    $region25: #{tpu_custom_call.1} parent=1 // pred_fallthru
      _
    // Predicated region
    $region26: #{tpu_custom_call.1} parent=1 // pred_check
      _
    $region27: #{tpu_custom_call.1} parent=1 // pred_check_branch
      %151 = sbr.rel (0) target = $region29
    $region28: #{tpu_custom_call.1} parent=1 // pred_region
      %152 = dma.done [#allocation4], 256
    $region29: #{tpu_custom_call.1} parent=1 // pred_fallthru
      _
    %153 = vsyncpa [#allocation3], 1
    %154 = vsyncpa [#allocation6], 1
    %155 = vsyncpa [#allocation4], 1

</llo_original>
